<compile_context>
chip_gen: v6e
topology: v6e:2x2x1
jax: 0.10.0
libtpu: 0.0.40
codegen_flags: <defaults>
</compile_context>

<pallas_src>
import functools
import math

import jax
import jax.numpy as jnp
from jax.experimental import pallas as pl
from jax.experimental.pallas import tpu as pltpu


# --------------------------------------------------------------------------------------
# Kernel: one program == one group of G packed alpha-configurations
# --------------------------------------------------------------------------------------
def _intent_space_kernel(seq_len, packed_dim,
                         uT_ref, x_ref, vT_ref, bias_ref, fcwT_ref, fcb_ref, out_ref):
    xv = x_ref[...]                                    # (S, I) f32
    uT = uT_ref[0]                                     # (GH, GH) block-diagonal u^T
    bias = bias_ref[...]                               # (1, GH) lane-tiled bias

    # ---- config-invariant input projection (tiled across the G packed configs) --------
    # One (S, I) @ (I, GH) matmul; lives in ~S vregs, no VMEM scratch round-trip.
    igates = jnp.dot(xv, vT_ref[...], preferred_element_type=jnp.float32)   # (S, GH)

    # ---- PyTorch rnncell early-return: first word containing an inf -------------------
    # (the hidden state BEFORE that word is returned, matching the PyTorch semantics)
    row_idx = jax.lax.broadcasted_iota(jnp.int32, xv.shape, 0)              # (S, I)
    inf_pos = jnp.where(jnp.isinf(xv), row_idx, seq_len)                    # (S, I)
    first_inf = jnp.min(jnp.min(inf_pos, axis=1, keepdims=True),
                        axis=0, keepdims=True)                              # (1, 1)

    # ---- sequential recurrence, statically unrolled (seq_len is static) ---------------
    hidden = jnp.zeros((1, packed_dim), jnp.float32)
    for t in range(seq_len):
        ig = igates[t:t + 1, :]                                             # (1, GH)
        # Full 128-wide block-diagonal tile -> one proper MXU matmul per step.
        hg = jnp.dot(hidden, uT, preferred_element_type=jnp.float32)        # (1, GH)
        new_hidden = jnp.tanh(ig + hg + bias)
        # Freeze from the first inf word onwards.  Keep the select (not arithmetic
        # masking) so the NaN/Inf produced on the inf row is discarded, not propagated.
        hidden = jnp.where(t < first_inf, new_hidden, hidden)

    # ---- fc + sigmoid: block-diagonal fc weight applies fc to every packed config -----
    logits = jnp.dot(hidden, fcwT_ref[...],
                     preferred_element_type=jnp.float32) + fcb_ref[...]     # (1, GH)
    out_ref[0] = jax.nn.sigmoid(logits)                                     # one dense store


# --------------------------------------------------------------------------------------
# One-time parameter transform (out of the grid-search hot loop)
# --------------------------------------------------------------------------------------
def prepare_intent_space(params, simplex=True, lane_width=128):
    """Call once per parameter set; reuse across all forward calls.

    lane_width: packed recurrence width.  128 is correct on every TPU generation;
    on v6e/v7x (2x256^2 MXUs) 256 packs twice as many configs per program for large
    grid searches.
    """
    f32 = jnp.float32
    W = params["W"].astype(f32)                        # (B, H, H)
    alpha = params["alpha"].astype(f32)                # (num_configs, B)
    if simplex:
        # normalise_alpha == softmax (max-subtracted for numerical safety).
        alpha = jax.nn.softmax(alpha, axis=-1)
    # TODO(synk): the Omega-weighted mixing branch (only active after add_omegas()) and
    # the detach= flag are not implemented; the default forward path is reproduced.
    # u_c = sum_b alpha[c, b] * W_b, stored transposed (kernel computes row @ u^T).
    uT = jnp.einsum("cb,bij->cji", alpha, W)           # (C, H, H)

    C, H = uT.shape[0], uT.shape[1]
    G = max(1, lane_width // H)                        # configs packed per program
    num_groups = -(-C // G)
    CG = num_groups * G
    GH = G * H

    # Block-diagonal per-group recurrence matrix: block (s, s) of group g is u^T of
    # config g*G+s (zero blocks for padding configs -> finite garbage, sliced off later).
    uT_pad = jnp.zeros((CG, H, H), f32).at[:C].set(uT).reshape(num_groups, G, H, H)
    eye_G = jnp.eye(G, dtype=f32)
    uT_bd = jnp.einsum("gsij,st->gsitj", uT_pad, eye_G).reshape(num_groups, GH, GH)

    # Block-diagonal fc weight (same fc applied to every packed config's hidden slice).
    fc_wT = params["fc_w"].T.astype(f32)               # (H, H)
    fcwT_bd = jnp.einsum("ij,st->sitj", fc_wT, eye_G).reshape(GH, GH)

    # Lane-tiled (config-invariant) v^T, bias, fc bias.
    vT_tiled = jnp.tile(params["v"].T.astype(f32), (1, G))                       # (I, GH)
    bias_tiled = jnp.tile(params["bias"].reshape(1, H).astype(f32), (1, G))      # (1, GH)
    fcb_tiled = jnp.tile(params["fc_b"].reshape(1, H).astype(f32), (1, G))       # (1, GH)

    return dict(
        uT=uT_bd, vT=vT_tiled, bias=bias_tiled, fcwT=fcwT_bd, fcb=fcb_tiled,
        hidden_dim=H, group_size=G, packed_dim=GH,
        num_groups=num_groups, num_configs=C,
    )


# --------------------------------------------------------------------------------------
# pallas_call wrapper
# --------------------------------------------------------------------------------------
def _run_kernel(prep, x, u_index_map, num_programs):
    S, I = x.shape
    H, G, GH = prep["hidden_dim"], prep["group_size"], prep["packed_dim"]
    kernel = functools.partial(_intent_space_kernel, S, GH)

    # "parallel" only pays off with >= 2 programs (v7x megacore); otherwise one program.
    sem = "parallel" if num_programs >= 2 else "arbitrary"

    cost = pl.CostEstimate(
        flops=num_programs * (2 * S * I * GH + 2 * S * GH * GH + 2 * GH * GH),
        transcendentals=num_programs * (S + 1) * GH,
        bytes_accessed=4 * (num_programs * GH * GH + GH * GH + S * I + I * GH
                            + 3 * GH + num_programs * GH),
    )

    out = pl.pallas_call(
        kernel,
        grid=(num_programs,),
        in_specs=[
            pl.BlockSpec((1, GH, GH), u_index_map),       # per-group block-diag u^T
            pl.BlockSpec((S, I), lambda g: (0, 0)),       # sentence (shared)
            pl.BlockSpec((I, GH), lambda g: (0, 0)),      # v^T, lane-tiled (shared)
            pl.BlockSpec((1, GH), lambda g: (0, 0)),      # bias, lane-tiled (shared)
            pl.BlockSpec((GH, GH), lambda g: (0, 0)),     # block-diag fc weight^T
            pl.BlockSpec((1, GH), lambda g: (0, 0)),      # fc bias, lane-tiled
        ],
        out_specs=pl.BlockSpec((1, 1, GH), lambda g: (g, 0, 0)),
        out_shape=jax.ShapeDtypeStruct((num_programs, 1, GH), jnp.float32),
        compiler_params=pltpu.CompilerParams(dimension_semantics=(sem,)),
        cost_estimate=cost,
    )(prep["uT"], x.astype(jnp.float32), prep["vT"], prep["bias"],
      prep["fcwT"], prep["fcb"])

    # Un-pack: lanes [s*H, (s+1)*H) of program g are config g*G + s.
    return out[:, 0, :].reshape(num_programs * G, H)


def intent_space_forward_all(prep, x):
    """All alpha configurations (the grid-search axis) in one pallas_call.
    Returns (num_configs, hidden_dim)."""
    rows = _run_kernel(prep, x, lambda g: (g, 0, 0), prep["num_groups"])
    return rows[:prep["num_configs"]]


def intent_space_forward(prep, x, alpha_int):
    """Single configuration; matches IntentSpace.forward(x, alpha_int) -> (1, hidden_dim).
    NOTE: alpha_int must be a static Python int (it selects the group via the index_map)."""
    G = prep["group_size"]
    group, slot = alpha_int // G, alpha_int % G
    rows = _run_kernel(prep, x, lambda g: (group, 0, 0), 1)
    return rows[slot:slot + 1]


# --------------------------------------------------------------------------------------
# Pure-JAX reference (eager) mirroring the PyTorch forward, for correctness checks
# --------------------------------------------------------------------------------------
def _reference_forward(params, x, alpha_int, simplex=True):
    alpha = params["alpha"][alpha_int].astype(jnp.float32)
    if simplex:
        alpha = jax.nn.softmax(alpha)
    u = jnp.einsum("b,bij->ij", alpha, params["W"].astype(jnp.float32))
    H = u.shape[0]
    v = params["v"].astype(jnp.float32)
    bias = params["bias"].astype(jnp.float32)
    hidden = jnp.zeros((H, 1), jnp.float32)
    for t in range(x.shape[0]):
        word = x[t].astype(jnp.float32)
        if bool(jnp.any(jnp.isinf(word))):
            break
        hidden = jnp.tanh(v @ word[:, None] + u @ hidden + bias)
    out = hidden.T @ params["fc_w"].T.astype(jnp.float32) \
        + params["fc_b"].astype(jnp.float32)[None, :]
    return jax.nn.sigmoid(out)


# --------------------------------------------------------------------------------------
# Deterministic synthetic parameters matching IntentSpace.__init__ shapes
# --------------------------------------------------------------------------------------
def init_params(key, input_size, hidden_dim, B, simplex):
    k = 1.0 / math.sqrt(hidden_dim)
    keys = jax.random.split(key, 6)
    bias = jax.random.uniform(keys[0], (hidden_dim, 1), minval=-k, maxval=k)
    v = jnp.eye(hidden_dim, input_size, dtype=jnp.float32)
    b_output = jax.random.uniform(keys[1], (1,), minval=-k, maxval=k)      # unused in forward
    a = jax.random.uniform(keys[2], (hidden_dim, 1), minval=-k, maxval=k)  # unused in forward
    fc_w = jax.random.uniform(keys[3], (hidden_dim, hidden_dim), minval=-k, maxval=k)
    fc_b = jax.random.uniform(keys[4], (hidden_dim,), minval=-k, maxval=k)
    W = jax.random.uniform(keys[5], (B, hidden_dim, hidden_dim), minval=-k, maxval=k)
    if simplex:
        K = 4.0
        alphas = []
        for x in range(B):
            al = jnp.full((B,), -K, dtype=jnp.float32)
            al = al.at[x].set(math.log(1.0 - (B - 1) * math.exp(-K)))
            alphas.append(al)
        alpha = jnp.stack(alphas)                                          # (B, B)
    else:
        alpha = jnp.eye(B, dtype=jnp.float32)
    return dict(bias=bias, v=v, fc_w=fc_w, fc_b=fc_b, W=W, alpha=alpha,
                b_output=b_output, a=a)


if __name__ == "__main__":
    input_size, hidden_dim, B, simplex = 32, 32, 4, True
    seq_len = 8

    key = jax.random.PRNGKey(0)
    pkey, xkey = jax.random.split(key)
    params = init_params(pkey, input_size, hidden_dim, B, simplex)
    prep = prepare_intent_space(params, simplex=simplex)      # one-time, out of hot path

    x = jax.random.normal(xkey, (seq_len, input_size), dtype=jnp.float32)  # the "sentence"
    x_inf = x.at[5, :].set(jnp.inf)                            # exercises the early-return path

    # Whole grid-search axis (all alpha configurations) packed block-diagonally:
    # B=4 configs at H=32 -> one group, one program, one (1,128)@(128,128) matmul/step.
    out_all = jax.block_until_ready(intent_space_forward_all(prep, x))
    assert out_all.shape == (B, hidden_dim)

    # Single-config forwards (same as IntentSpace.forward(x, alpha_int)).
    out1 = jax.block_until_ready(intent_space_forward(prep, x, alpha_int=1))
    out_inf = jax.block_until_ready(intent_space_forward(prep, x_inf, alpha_int=2))
    assert out1.shape == (1, hidden_dim)

    # Correctness vs. the pure-JAX mirror of the PyTorch forward.
    ref1 = _reference_forward(params, x, 1, simplex)
    ref_all = jnp.concatenate([_reference_forward(params, x, c, simplex) for c in range(B)],
                              axis=0)
    ref_inf = _reference_forward(params, x_inf, 2, simplex)

    assert bool(jnp.all(jnp.isfinite(out_all)))
    assert bool(jnp.all(jnp.isfinite(out_inf)))
    assert jnp.allclose(out1, ref1, atol=1e-4, rtol=1e-4)
    assert jnp.allclose(out_all, ref_all, atol=1e-4, rtol=1e-4)
    assert jnp.allclose(out_inf, ref_inf, atol=1e-4, rtol=1e-4)
    print("KERNEL_OK")
</pallas_src>

<mosaic_0001>
module attributes {stable_mosaic.version = 11 : i64} {
  func.func @_intent_space_kernel(%arg0: i32, %arg1: memref<1x128x128xf32, #tpu.memory_space<vmem>>, %arg2: memref<8x32xf32, #tpu.memory_space<vmem>>, %arg3: memref<32x128xf32, #tpu.memory_space<vmem>>, %arg4: memref<1x128xf32, #tpu.memory_space<vmem>>, %arg5: memref<128x128xf32, #tpu.memory_space<vmem>>, %arg6: memref<1x128xf32, #tpu.memory_space<vmem>>, %arg7: memref<1x1x128xf32, #tpu.memory_space<vmem>>) attributes {dimension_semantics = [#tpu.dimension_semantics<arbitrary>], iteration_bounds = array<i64: 1>, scalar_prefetch = 0 : i64, scratch_operands = 0 : i64, tpu.core_type = #tpu.core_type<tc>, window_params = [{transform_indices = @transform_0, window_bounds = array<i64: 1, 128, 128>}, {pipeline_mode = #tpu.pipeline_mode<synchronous>, transform_indices = @transform_1, window_bounds = array<i64: 8, 32>}, {pipeline_mode = #tpu.pipeline_mode<synchronous>, transform_indices = @transform_2, window_bounds = array<i64: 32, 128>}, {pipeline_mode = #tpu.pipeline_mode<synchronous>, transform_indices = @transform_3, window_bounds = array<i64: 1, 128>}, {pipeline_mode = #tpu.pipeline_mode<synchronous>, transform_indices = @transform_4, window_bounds = array<i64: 128, 128>}, {pipeline_mode = #tpu.pipeline_mode<synchronous>, transform_indices = @transform_5, window_bounds = array<i64: 1, 128>}, {transform_indices = @transform_6, window_bounds = array<i64: 1, 1, 128>}]} {
    %c0 = arith.constant 0 : index
    %c0_0 = arith.constant 0 : index
    %0 = vector.load %arg2[%c0, %c0_0] : memref<8x32xf32, #tpu.memory_space<vmem>>, vector<8x32xf32>
    %c0_1 = arith.constant 0 : index
    %c0_2 = arith.constant 0 : index
    %c0_3 = arith.constant 0 : index
    %1 = vector.load %arg1[%c0_1, %c0_2, %c0_3] : memref<1x128x128xf32, #tpu.memory_space<vmem>>, vector<1x128x128xf32>
    %2 = vector.shape_cast %1 : vector<1x128x128xf32> to vector<128x128xf32>
    %c0_4 = arith.constant 0 : index
    %c0_5 = arith.constant 0 : index
    %3 = vector.load %arg4[%c0_4, %c0_5] : memref<1x128xf32, #tpu.memory_space<vmem>>, vector<1x128xf32>
    %c0_6 = arith.constant 0 : index
    %c0_7 = arith.constant 0 : index
    %4 = vector.load %arg3[%c0_6, %c0_7] : memref<32x128xf32, #tpu.memory_space<vmem>>, vector<32x128xf32>
    %cst = arith.constant dense<0.000000e+00> : vector<8x128xf32>
    %5 = tpu.matmul %0, %4, %cst {dimension_numbers = #tpu.dot_dimension_numbers<[1], [0], [0], [1], [0, 0, 1, 1], [], []>} : vector<8x32xf32>, vector<32x128xf32>, vector<8x128xf32> -> vector<8x128xf32>
    %6 = tpu.iota {dimensions = array<i32: 0>} : vector<8x32xi32>
    %7 = math.absf %0 : vector<8x32xf32>
    %cst_8 = arith.constant 0x7F800000 : f32
    %8 = vector.broadcast %cst_8 : f32 to vector<8x32xf32>
    %9 = arith.cmpf oeq, %7, %8 : vector<8x32xf32>
    %c8_i32 = arith.constant 8 : i32
    %10 = vector.broadcast %c8_i32 : i32 to vector<8x32xi32>
    %11 = arith.select %9, %6, %10 : vector<8x32xi1>, vector<8x32xi32>
    %cst_9 = arith.constant dense<2147483647> : vector<8xi32>
    %12 = vector.multi_reduction <minsi>, %11, %cst_9 [1] : vector<8x32xi32> to vector<8xi32>
    %13 = vector.shape_cast %12 : vector<8xi32> to vector<8x1xi32>
    %cst_10 = arith.constant dense<2147483647> : vector<1xi32>
    %14 = vector.multi_reduction <minsi>, %13, %cst_10 [0] : vector<8x1xi32> to vector<1xi32>
    %15 = vector.shape_cast %14 : vector<1xi32> to vector<1x1xi32>
    %cst_11 = arith.constant 0.000000e+00 : f32
    %16 = vector.broadcast %cst_11 : f32 to vector<1x128xf32>
    %17 = vector.extract_strided_slice %5 {offsets = [0, 0], sizes = [1, 128], strides = [1, 1]} : vector<8x128xf32> to vector<1x128xf32>
    %cst_12 = arith.constant dense<0.000000e+00> : vector<1x128xf32>
    %18 = tpu.matmul %16, %2, %cst_12 {dimension_numbers = #tpu.dot_dimension_numbers<[1], [0], [0], [1], [0, 0, 1, 1], [], []>} : vector<1x128xf32>, vector<128x128xf32>, vector<1x128xf32> -> vector<1x128xf32>
    %19 = arith.addf %17, %18 : vector<1x128xf32>
    %20 = arith.addf %19, %3 : vector<1x128xf32>
    %21 = math.tanh %20 : vector<1x128xf32>
    %c0_i32 = arith.constant 0 : i32
    %22 = vector.broadcast %c0_i32 : i32 to vector<1x1xi32>
    %23 = arith.cmpi sgt, %15, %22 : vector<1x1xi32>
    %24 = vector.shape_cast %23 : vector<1x1xi1> to vector<1x1xi1>
    %25 = vector.broadcast %24 : vector<1x1xi1> to vector<1x128xi1>
    %26 = arith.select %25, %21, %16 : vector<1x128xi1>, vector<1x128xf32>
    %27 = vector.extract_strided_slice %5 {offsets = [1, 0], sizes = [1, 128], strides = [1, 1]} : vector<8x128xf32> to vector<1x128xf32>
    %cst_13 = arith.constant dense<0.000000e+00> : vector<1x128xf32>
    %28 = tpu.matmul %26, %2, %cst_13 {dimension_numbers = #tpu.dot_dimension_numbers<[1], [0], [0], [1], [0, 0, 1, 1], [], []>} : vector<1x128xf32>, vector<128x128xf32>, vector<1x128xf32> -> vector<1x128xf32>
    %29 = arith.addf %27, %28 : vector<1x128xf32>
    %30 = arith.addf %29, %3 : vector<1x128xf32>
    %31 = math.tanh %30 : vector<1x128xf32>
    %c1_i32 = arith.constant 1 : i32
    %32 = vector.broadcast %c1_i32 : i32 to vector<1x1xi32>
    %33 = arith.cmpi sgt, %15, %32 : vector<1x1xi32>
    %34 = vector.shape_cast %33 : vector<1x1xi1> to vector<1x1xi1>
    %35 = vector.broadcast %34 : vector<1x1xi1> to vector<1x128xi1>
    %36 = arith.select %35, %31, %26 : vector<1x128xi1>, vector<1x128xf32>
    %37 = vector.extract_strided_slice %5 {offsets = [2, 0], sizes = [1, 128], strides = [1, 1]} : vector<8x128xf32> to vector<1x128xf32>
    %cst_14 = arith.constant dense<0.000000e+00> : vector<1x128xf32>
    %38 = tpu.matmul %36, %2, %cst_14 {dimension_numbers = #tpu.dot_dimension_numbers<[1], [0], [0], [1], [0, 0, 1, 1], [], []>} : vector<1x128xf32>, vector<128x128xf32>, vector<1x128xf32> -> vector<1x128xf32>
    %39 = arith.addf %37, %38 : vector<1x128xf32>
    %40 = arith.addf %39, %3 : vector<1x128xf32>
    %41 = math.tanh %40 : vector<1x128xf32>
    %c2_i32 = arith.constant 2 : i32
    %42 = vector.broadcast %c2_i32 : i32 to vector<1x1xi32>
    %43 = arith.cmpi sgt, %15, %42 : vector<1x1xi32>
    %44 = vector.shape_cast %43 : vector<1x1xi1> to vector<1x1xi1>
    %45 = vector.broadcast %44 : vector<1x1xi1> to vector<1x128xi1>
    %46 = arith.select %45, %41, %36 : vector<1x128xi1>, vector<1x128xf32>
    %47 = vector.extract_strided_slice %5 {offsets = [3, 0], sizes = [1, 128], strides = [1, 1]} : vector<8x128xf32> to vector<1x128xf32>
    %cst_15 = arith.constant dense<0.000000e+00> : vector<1x128xf32>
    %48 = tpu.matmul %46, %2, %cst_15 {dimension_numbers = #tpu.dot_dimension_numbers<[1], [0], [0], [1], [0, 0, 1, 1], [], []>} : vector<1x128xf32>, vector<128x128xf32>, vector<1x128xf32> -> vector<1x128xf32>
    %49 = arith.addf %47, %48 : vector<1x128xf32>
    %50 = arith.addf %49, %3 : vector<1x128xf32>
    %51 = math.tanh %50 : vector<1x128xf32>
    %c3_i32 = arith.constant 3 : i32
    %52 = vector.broadcast %c3_i32 : i32 to vector<1x1xi32>
    %53 = arith.cmpi sgt, %15, %52 : vector<1x1xi32>
    %54 = vector.shape_cast %53 : vector<1x1xi1> to vector<1x1xi1>
    %55 = vector.broadcast %54 : vector<1x1xi1> to vector<1x128xi1>
    %56 = arith.select %55, %51, %46 : vector<1x128xi1>, vector<1x128xf32>
    %57 = vector.extract_strided_slice %5 {offsets = [4, 0], sizes = [1, 128], strides = [1, 1]} : vector<8x128xf32> to vector<1x128xf32>
    %cst_16 = arith.constant dense<0.000000e+00> : vector<1x128xf32>
    %58 = tpu.matmul %56, %2, %cst_16 {dimension_numbers = #tpu.dot_dimension_numbers<[1], [0], [0], [1], [0, 0, 1, 1], [], []>} : vector<1x128xf32>, vector<128x128xf32>, vector<1x128xf32> -> vector<1x128xf32>
    %59 = arith.addf %57, %58 : vector<1x128xf32>
    %60 = arith.addf %59, %3 : vector<1x128xf32>
    %61 = math.tanh %60 : vector<1x128xf32>
    %c4_i32 = arith.constant 4 : i32
    %62 = vector.broadcast %c4_i32 : i32 to vector<1x1xi32>
    %63 = arith.cmpi sgt, %15, %62 : vector<1x1xi32>
    %64 = vector.shape_cast %63 : vector<1x1xi1> to vector<1x1xi1>
    %65 = vector.broadcast %64 : vector<1x1xi1> to vector<1x128xi1>
    %66 = arith.select %65, %61, %56 : vector<1x128xi1>, vector<1x128xf32>
    %67 = vector.extract_strided_slice %5 {offsets = [5, 0], sizes = [1, 128], strides = [1, 1]} : vector<8x128xf32> to vector<1x128xf32>
    %cst_17 = arith.constant dense<0.000000e+00> : vector<1x128xf32>
    %68 = tpu.matmul %66, %2, %cst_17 {dimension_numbers = #tpu.dot_dimension_numbers<[1], [0], [0], [1], [0, 0, 1, 1], [], []>} : vector<1x128xf32>, vector<128x128xf32>, vector<1x128xf32> -> vector<1x128xf32>
    %69 = arith.addf %67, %68 : vector<1x128xf32>
    %70 = arith.addf %69, %3 : vector<1x128xf32>
    %71 = math.tanh %70 : vector<1x128xf32>
    %c5_i32 = arith.constant 5 : i32
    %72 = vector.broadcast %c5_i32 : i32 to vector<1x1xi32>
    %73 = arith.cmpi sgt, %15, %72 : vector<1x1xi32>
    %74 = vector.shape_cast %73 : vector<1x1xi1> to vector<1x1xi1>
    %75 = vector.broadcast %74 : vector<1x1xi1> to vector<1x128xi1>
    %76 = arith.select %75, %71, %66 : vector<1x128xi1>, vector<1x128xf32>
    %77 = vector.extract_strided_slice %5 {offsets = [6, 0], sizes = [1, 128], strides = [1, 1]} : vector<8x128xf32> to vector<1x128xf32>
    %cst_18 = arith.constant dense<0.000000e+00> : vector<1x128xf32>
    %78 = tpu.matmul %76, %2, %cst_18 {dimension_numbers = #tpu.dot_dimension_numbers<[1], [0], [0], [1], [0, 0, 1, 1], [], []>} : vector<1x128xf32>, vector<128x128xf32>, vector<1x128xf32> -> vector<1x128xf32>
    %79 = arith.addf %77, %78 : vector<1x128xf32>
    %80 = arith.addf %79, %3 : vector<1x128xf32>
    %81 = math.tanh %80 : vector<1x128xf32>
    %c6_i32 = arith.constant 6 : i32
    %82 = vector.broadcast %c6_i32 : i32 to vector<1x1xi32>
    %83 = arith.cmpi sgt, %15, %82 : vector<1x1xi32>
    %84 = vector.shape_cast %83 : vector<1x1xi1> to vector<1x1xi1>
    %85 = vector.broadcast %84 : vector<1x1xi1> to vector<1x128xi1>
    %86 = arith.select %85, %81, %76 : vector<1x128xi1>, vector<1x128xf32>
    %87 = vector.extract_strided_slice %5 {offsets = [7, 0], sizes = [1, 128], strides = [1, 1]} : vector<8x128xf32> to vector<1x128xf32>
    %cst_19 = arith.constant dense<0.000000e+00> : vector<1x128xf32>
    %88 = tpu.matmul %86, %2, %cst_19 {dimension_numbers = #tpu.dot_dimension_numbers<[1], [0], [0], [1], [0, 0, 1, 1], [], []>} : vector<1x128xf32>, vector<128x128xf32>, vector<1x128xf32> -> vector<1x128xf32>
    %89 = arith.addf %87, %88 : vector<1x128xf32>
    %90 = arith.addf %89, %3 : vector<1x128xf32>
    %91 = math.tanh %90 : vector<1x128xf32>
    %c7_i32 = arith.constant 7 : i32
    %92 = vector.broadcast %c7_i32 : i32 to vector<1x1xi32>
    %93 = arith.cmpi sgt, %15, %92 : vector<1x1xi32>
    %94 = vector.shape_cast %93 : vector<1x1xi1> to vector<1x1xi1>
    %95 = vector.broadcast %94 : vector<1x1xi1> to vector<1x128xi1>
    %96 = arith.select %95, %91, %86 : vector<1x128xi1>, vector<1x128xf32>
    %c0_20 = arith.constant 0 : index
    %c0_21 = arith.constant 0 : index
    %97 = vector.load %arg5[%c0_20, %c0_21] : memref<128x128xf32, #tpu.memory_space<vmem>>, vector<128x128xf32>
    %cst_22 = arith.constant dense<0.000000e+00> : vector<1x128xf32>
    %98 = tpu.matmul %96, %97, %cst_22 {dimension_numbers = #tpu.dot_dimension_numbers<[1], [0], [0], [1], [0, 0, 1, 1], [], []>} : vector<1x128xf32>, vector<128x128xf32>, vector<1x128xf32> -> vector<1x128xf32>
    %c0_23 = arith.constant 0 : index
    %c0_24 = arith.constant 0 : index
    %99 = vector.load %arg6[%c0_23, %c0_24] : memref<1x128xf32, #tpu.memory_space<vmem>>, vector<1x128xf32>
    %100 = arith.addf %98, %99 : vector<1x128xf32>
    %101 = arith.negf %100 : vector<1x128xf32>
    %102 = math.exp %101 : vector<1x128xf32>
    %cst_25 = arith.constant 1.000000e+00 : f32
    %103 = vector.broadcast %cst_25 : f32 to vector<1x128xf32>
    %104 = arith.addf %103, %102 : vector<1x128xf32>
    %105 = arith.divf %103, %104 : vector<1x128xf32>
    %c0_26 = arith.constant 0 : index
    %c0_27 = arith.constant 0 : index
    %c0_28 = arith.constant 0 : index
    %106 = vector.load %arg7[%c0_26, %c0_27, %c0_28] : memref<1x1x128xf32, #tpu.memory_space<vmem>>, vector<1x1x128xf32>
    %107 = vector.shape_cast %106 : vector<1x1x128xf32> to vector<1x128xf32>
    %108 = vector.shape_cast %105 : vector<1x128xf32> to vector<1x1x128xf32>
    tpu.vector_store %arg7[%c0_26, %c0_27, %c0_28], %108 {strides = array<i32>} : memref<1x1x128xf32, #tpu.memory_space<vmem>>, vector<1x1x128xf32>,
    return
  }
  func.func @transform_0(%arg0: i32) -> (i32, i32, i32) {
    %c0_i32 = arith.constant 0 : i32
    %c0_i32_0 = arith.constant 0 : i32
    %c0_i32_1 = arith.constant 0 : i32
    return %arg0, %c0_i32, %c0_i32_0 : i32, i32, i32
  }
  func.func @transform_1(%arg0: i32) -> (i32, i32) {
    %c0_i32 = arith.constant 0 : i32
    %c0_i32_0 = arith.constant 0 : i32
    %c0_i32_1 = arith.constant 0 : i32
    return %c0_i32, %c0_i32_0 : i32, i32
  }
  func.func @transform_2(%arg0: i32) -> (i32, i32) {
    %c0_i32 = arith.constant 0 : i32
    %c0_i32_0 = arith.constant 0 : i32
    %c0_i32_1 = arith.constant 0 : i32
    return %c0_i32, %c0_i32_0 : i32, i32
  }
  func.func @transform_3(%arg0: i32) -> (i32, i32) {
    %c0_i32 = arith.constant 0 : i32
    %c0_i32_0 = arith.constant 0 : i32
    %c0_i32_1 = arith.constant 0 : i32
    return %c0_i32, %c0_i32_0 : i32, i32
  }
  func.func @transform_4(%arg0: i32) -> (i32, i32) {
    %c0_i32 = arith.constant 0 : i32
    %c0_i32_0 = arith.constant 0 : i32
    %c0_i32_1 = arith.constant 0 : i32
    return %c0_i32, %c0_i32_0 : i32, i32
  }
  func.func @transform_5(%arg0: i32) -> (i32, i32) {
    %c0_i32 = arith.constant 0 : i32
    %c0_i32_0 = arith.constant 0 : i32
    %c0_i32_1 = arith.constant 0 : i32
    return %c0_i32, %c0_i32_0 : i32, i32
  }
  func.func @transform_6(%arg0: i32) -> (i32, i32, i32) {
    %c0_i32 = arith.constant 0 : i32
    %c0_i32_0 = arith.constant 0 : i32
    %c0_i32_1 = arith.constant 0 : i32
    return %arg0, %c0_i32, %c0_i32_0 : i32, i32, i32
  }
}

</mosaic_0001>

<llo_original>
// kernel: tpu_custom_call.1
$region0: #{tpu_custom_call.1}
  #allocation0 [shape = 'u32[]', space=smem, size = 0x4, offset = 0x4, fixed_abs, tag = 'smem constant byte address 0x4 - core index']
  #allocation1 [shape = 'u32[144,128]{1,0:T(1,128)}', space=vmem, size = 0x12000, scoped, tag = 'internal scratch']
  %s0 = inlined_call_operand.hbm [shape: f32[1,128,128], index: 0, kind: input, shape index: {}]
  %s1 = inlined_call_operand.hbm [shape: f32[8,32], index: 1, kind: input, shape index: {}]
  %s2 = inlined_call_operand.hbm [shape: f32[32,128], index: 2, kind: input, shape index: {}]
  %s3 = inlined_call_operand.vmem [shape: f32[1,128], index: 3, kind: input, shape index: {}]
  %s4 = inlined_call_operand.hbm [shape: f32[128,128], index: 4, kind: input, shape index: {}]
  %s5 = inlined_call_operand.vmem [shape: f32[1,128], index: 5, kind: input, shape index: {}]
  %s6 = inlined_call_operand.hbm [shape: f32[1,1,128], index: 6, kind: output, shape index: {}]
  %s7 = sld [smem:[#allocation0]]
  $region50: #{tpu_custom_call.1} parent=0
    _
  %s9 = ssub.s32 1, %s7
  %s10 = scalar_select 0, %s9, %s7
  $region1: #{tpu_custom_call.1} parent=0
    #allocation2 [shape = 'u8[65536]{0}', space=vmem, size = 0x10000, scoped, tag = 'input window, operand 0, single buffered']
    #allocation3 [shape = 's32[1]{0}', space=sflag, size = 0x4, scoped, tag = 'scoped memory for tpu_custom_call.1']
    #allocation4 [shape = 's32[1]{0}', space=sflag, size = 0x4, scoped, tag = 'scoped memory for tpu_custom_call.1']
    #allocation5 [shape = 'u8[4096]{0}', space=vmem, size = 0x1000, scoped, tag = 'input window, operand 1, single buffered']
    #allocation6 [shape = 's32[1]{0}', space=sflag, size = 0x4, scoped, tag = 'scoped memory for tpu_custom_call.1']
    #allocation7 [shape = 'u8[16384]{0}', space=vmem, size = 0x4000, scoped, tag = 'input window, operand 2, single buffered']
    #allocation8 [shape = 'u8[65536]{0}', space=vmem, size = 0x10000, scoped, tag = 'input window, operand 4, single buffered']
    #allocation9 [shape = 's32[1]{0}', space=sflag, size = 0x4, scoped, tag = 'scoped memory for tpu_custom_call.1']
    #allocation10 [shape = 'u8[512]{0}', space=vmem, size = 0x400, scoped, tag = 'output window, operand 0, single buffered']
    %11 = vsyncpa [#allocation3], 0
    %12 = vsyncpa [#allocation6], 0
    %13 = vsyncpa [#allocation9], 0
    %14 = vsyncpa [#allocation4], 0
    // Predicated region
    $region2: #{tpu_custom_call.1} parent=1 // pred_check
      _
    $region3: #{tpu_custom_call.1} parent=1 // pred_check_branch
      %16 = sbr.rel (0) target = $region5
    $region4: #{tpu_custom_call.1} parent=1 // pred_region
      %s18 = ssub.s32 2048, 2048
      %19 = vsyncadd [#allocation3], %s18
      %s20 = sshll.u32 [#allocation2], 4
      %s21 = int_to_ptr.vmem [resolvable:$true] %s20
      %26 = dma.hbm_to_vmem [thread:$0]  %s0, 2048, %s21, [#allocation3], 128, 128, 8
    $region5: #{tpu_custom_call.1} parent=1 // pred_fallthru
      _
    // Predicated region
    $region6: #{tpu_custom_call.1} parent=1 // pred_check
      _
    $region7: #{tpu_custom_call.1} parent=1 // pred_check_branch
      %28 = sbr.rel (0) target = $region9
    $region8: #{tpu_custom_call.1} parent=1 // pred_region
      %s30 = ssub.s32 128, 128
      %31 = vsyncadd [#allocation6], %s30
      %s33 = sshll.u32 [#allocation5], 4
      %s34 = int_to_ptr.vmem [resolvable:$true] %s33
      %36 = dma.hbm_to_vmem [thread:$0]  %s1, 128, %s34, [#allocation6]
    $region9: #{tpu_custom_call.1} parent=1 // pred_fallthru
      _
    // Predicated region
    $region10: #{tpu_custom_call.1} parent=1 // pred_check
      _
    $region11: #{tpu_custom_call.1} parent=1 // pred_check_branch
      %38 = sbr.rel (0) target = $region13
    $region12: #{tpu_custom_call.1} parent=1 // pred_region
      %s40 = ssub.s32 512, 512
      %41 = vsyncadd [#allocation6], %s40
      %s42 = sshll.u32 [#allocation7], 4
      %s43 = int_to_ptr.vmem [resolvable:$true] %s42
      %48 = dma.hbm_to_vmem [thread:$0]  %s2, 512, %s43, [#allocation6], 128, 128, 8
    $region13: #{tpu_custom_call.1} parent=1 // pred_fallthru
      _
    // Predicated region
    $region14: #{tpu_custom_call.1} parent=1 // pred_check
      _
    $region15: #{tpu_custom_call.1} parent=1 // pred_check_branch
      %50 = sbr.rel (0) target = $region17
    $region16: #{tpu_custom_call.1} parent=1 // pred_region
      _
    $region17: #{tpu_custom_call.1} parent=1 // pred_fallthru
      _
    // Predicated region
    $region18: #{tpu_custom_call.1} parent=1 // pred_check
      _
    $region19: #{tpu_custom_call.1} parent=1 // pred_check_branch
      %52 = sbr.rel (0) target = $region21
    $region20: #{tpu_custom_call.1} parent=1 // pred_region
      %s54 = ssub.s32 2048, 2048
      %55 = vsyncadd [#allocation9], %s54
      %s56 = sshll.u32 [#allocation8], 4
      %s57 = int_to_ptr.vmem [resolvable:$true] %s56
      %62 = dma.hbm_to_vmem [thread:$0]  %s4, 2048, %s57, [#allocation9], 128, 128, 8
    $region21: #{tpu_custom_call.1} parent=1 // pred_fallthru
      _
    // Predicated region
    $region22: #{tpu_custom_call.1} parent=1 // pred_check
      _
    $region23: #{tpu_custom_call.1} parent=1 // pred_check_branch
      %64 = sbr.rel (0) target = $region25
    $region24: #{tpu_custom_call.1} parent=1 // pred_region
      _
    $region25: #{tpu_custom_call.1} parent=1 // pred_fallthru
      _
    // Predicated region
    $region26: #{tpu_custom_call.1} parent=1 // pred_check
      _
    $region27: #{tpu_custom_call.1} parent=1 // pred_check_branch
      %66 = sbr.rel (0) target = $region29
    $region28: #{tpu_custom_call.1} parent=1 // pred_region
      %67 = dma.done [#allocation3], 2048
    $region29: #{tpu_custom_call.1} parent=1 // pred_fallthru
      _
    // Predicated region
    $region30: #{tpu_custom_call.1} parent=1 // pred_check
      _
    $region31: #{tpu_custom_call.1} parent=1 // pred_check_branch
      %69 = sbr.rel (0) target = $region33
    $region32: #{tpu_custom_call.1} parent=1 // pred_region
      %70 = dma.done [#allocation6], 128
    $region33: #{tpu_custom_call.1} parent=1 // pred_fallthru
      _
    // Predicated region
    $region34: #{tpu_custom_call.1} parent=1 // pred_check
      _
    $region35: #{tpu_custom_call.1} parent=1 // pred_check_branch
      %72 = sbr.rel (0) target = $region37
    $region36: #{tpu_custom_call.1} parent=1 // pred_region
      %73 = dma.done [#allocation6], 512
    $region37: #{tpu_custom_call.1} parent=1 // pred_fallthru
      _
    // Predicated region
    $region38: #{tpu_custom_call.1} parent=1 // pred_check
      _
    $region39: #{tpu_custom_call.1} parent=1 // pred_check_branch
      %75 = sbr.rel (0) target = $region41
    $region40: #{tpu_custom_call.1} parent=1 // pred_region
      %76 = dma.done [#allocation9], 2048
    $region41: #{tpu_custom_call.1} parent=1 // pred_fallthru
      _
    %v77 = vld [vmem:[#allocation5] sm:$0xff]
    %v78 = vld [vmem:[#allocation2] sm:$0xff]
    %v79 = vld [vmem:[#allocation2 + $0x8] sm:$0xff]
    %v80 = vld [vmem:[#allocation2 + $0x10] sm:$0xff]
    %v81 = vld [vmem:[#allocation2 + $0x18] sm:$0xff]
    %v82 = vld [vmem:[#allocation2 + $0x20] sm:$0xff]
    %v83 = vld [vmem:[#allocation2 + $0x28] sm:$0xff]
    %v84 = vld [vmem:[#allocation2 + $0x30] sm:$0xff]
    %v85 = vld [vmem:[#allocation2 + $0x38] sm:$0xff]
    %v86 = vld [vmem:[#allocation2 + $0x40] sm:$0xff]
    %v87 = vld [vmem:[#allocation2 + $0x48] sm:$0xff]
    %v88 = vld [vmem:[#allocation2 + $0x50] sm:$0xff]
    %v89 = vld [vmem:[#allocation2 + $0x58] sm:$0xff]
    %v90 = vld [vmem:[#allocation2 + $0x60] sm:$0xff]
    %v91 = vld [vmem:[#allocation2 + $0x68] sm:$0xff]
    %v92 = vld [vmem:[#allocation2 + $0x70] sm:$0xff]
    %v93 = vld [vmem:[#allocation2 + $0x78] sm:$0xff]
    %v94 = vld [vmem:[%s3] sm:$0x1]
    %v95 = vld [vmem:[#allocation7] sm:$0xff]
    %v96 = vld [vmem:[#allocation7 + $0x8] sm:$0xff]
    %v97 = vld [vmem:[#allocation7 + $0x10] sm:$0xff]
    %v98 = vld [vmem:[#allocation7 + $0x18] sm:$0xff]
    %vm99 = vcmask 261120
    %v101 = vsel %vm99, %v77, 0
    %103 = vmatprep.subr.mxu0 0.0
    %104 = vmatpush1.msra.mxu0 0.0
    %105 = vmatprep.subr.mxu0 0.0
    %106 = vmatpush1.msra.mxu0 0.0
    %107 = vmatprep.subr.mxu0 0.0
    %108 = vmatpush1.msra.mxu0 0.0
    %109 = vmatprep.subr.mxu0 0.0
    %110 = vmatpush1.msra.mxu0 0.0
    %111 = vmatprep.subr.mxu0 0.0
    %112 = vmatpush1.msra.mxu0 0.0
    %113 = vmatprep.subr.mxu0 0.0
    %114 = vmatpush1.msra.mxu0 0.0
    %115 = vmatprep.subr.mxu0 0.0
    %116 = vmatpush1.msra.mxu0 0.0
    %117 = vmatprep.subr.mxu0 0.0
    %118 = vmatpush1.msra.mxu0 0.0
    %119 = vmatprep.subr.mxu0 0.0
    %120 = vmatpush1.msra.mxu0 0.0
    %121 = vmatprep.subr.mxu0 0.0
    %122 = vmatpush1.msra.mxu0 0.0
    %123 = vmatprep.subr.mxu0 0.0
    %124 = vmatpush1.msra.mxu0 0.0
    %125 = vmatprep.subr.mxu0 0.0
    %126 = vmatpush1.msra.mxu0 0.0
    %127 = vmatprep.subr.mxu0 0.0
    %128 = vmatpush1.msra.mxu0 %v98
    %129 = vmatprep.subr.mxu0 0.0
    %130 = vmatpush1.msra.mxu0 %v97
    %131 = vmatprep.subr.mxu0 0.0
    %132 = vmatpush1.msra.mxu0 %v96
    %133 = vmatprep.subr.mxu0 0.0
    %134 = vmatpush1.msra.mxu0 %v95
    %135 = vmatprep.subr.mxu0 0.0
    %136 = vmatpush2.msra.mxu0 0.0
    %137 = vmatprep.subr.mxu0 0.0
    %138 = vmatpush2.msra.mxu0 0.0
    %139 = vmatprep.subr.mxu0 0.0
    %140 = vmatpush2.msra.mxu0 0.0
    %141 = vmatprep.subr.mxu0 0.0
    %142 = vmatpush2.msra.mxu0 0.0
    %143 = vmatprep.subr.mxu0 0.0
    %144 = vmatpush2.msra.mxu0 0.0
    %145 = vmatprep.subr.mxu0 0.0
    %146 = vmatpush2.msra.mxu0 0.0
    %147 = vmatprep.subr.mxu0 0.0
    %148 = vmatpush2.msra.mxu0 0.0
    %149 = vmatprep.subr.mxu0 0.0
    %150 = vmatpush2.msra.mxu0 0.0
    %151 = vmatprep.subr.mxu0 0.0
    %152 = vmatpush2.msra.mxu0 0.0
    %153 = vmatprep.subr.mxu0 0.0
    %154 = vmatpush2.msra.mxu0 0.0
    %155 = vmatprep.subr.mxu0 0.0
    %156 = vmatpush2.msra.mxu0 0.0
    %157 = vmatprep.subr.mxu0 0.0
    %158 = vmatpush2.msra.mxu0 0.0
    %159 = vmatprep.subr.mxu0 0.0
    %160 = vmatpush2.msra.mxu0 0.0
    %161 = vmatprep.subr.mxu0 0.0
    %162 = vmatpush2.msra.mxu0 0.0
    %163 = vmatprep.subr.mxu0 0.0
    %164 = vmatpush2.msra.mxu0 0.0
    %165 = vmatprep.subr.mxu0 0.0
    %166 = vmatpush2.msra.mxu0 0.0
    %167 = vmatprep.mubr.f32.mxu0 0.0
    %168 = vmatmul.mubr.f32.gmra.mxu0 %v101
    %v169 = vpop.f32.mrf.mxu0
    %v170 = vadd.f32 0.0, %v169
    %v171 = vpop.f32.mrf.mxu0
    %172 = vdwg.mxu0
    %v173 = vlaneseq
    %v174 = vshrl.u32 %v173, 7
    %v175 = vand.u32 2147483647, %v77
    %vm176 = vcmp.eq.f32.partialorder %v175, inf
    %v177 = vsel %vm176, %v174, 8
    %v178 = vsel %vm99, %v177, 2147483647
    %v179 = vand.u32 %v178, 65535
    %v180 = vshra.s32 %v178, 16
    %v181 = vcvt.s32.f32 %v179
    %v182 = vcvt.s32.f32 %v180
    %183 = vmin.xlane.f32.xlu0 %v182
    %v184 = vpop.xlane.xlu0 %183
    %vm185 = vcmp.eq.f32.partialorder %v182, %v184
    %v186 = vsel %vm185, %v181, inf
    %187 = vmin.xlane.f32.xlu0 %v186
    %v188 = vpop.xlane.xlu0 %187
    %v189 = vcvt.f32.s32 %v188
    %v190 = vcvt.f32.s32 %v184
    %v191 = vshll.u32 %v190, 16
    %v192 = vadd.s32 %v191, %v189
    %v193 = vrot.slane %v192, 4
    %vm194 = vcmp.lt.s32.totalorder %v192, %v193
    %v195 = vsel %vm194, %v192, %v193
    %v196 = vrot.slane %v195, 2
    %vm197 = vcmp.lt.s32.totalorder %v195, %v196
    %v198 = vsel %vm197, %v195, %v196
    %v199 = vrot.slane %v198, 1
    %vm200 = vcmp.lt.s32.totalorder %v198, %v199
    %v201 = vsel %vm200, %v198, %v199
    %202 = vmatprep.subr.mxu0 0.0
    %203 = vmatpush1.msra.mxu0 %v93
    %204 = vmatprep.subr.mxu0 0.0
    %205 = vmatpush1.msra.mxu0 %v92
    %206 = vmatprep.subr.mxu0 0.0
    %207 = vmatpush1.msra.mxu0 %v91
    %208 = vmatprep.subr.mxu0 0.0
    %209 = vmatpush1.msra.mxu0 %v90
    %210 = vmatprep.subr.mxu0 0.0
    %211 = vmatpush1.msra.mxu0 %v89
    %212 = vmatprep.subr.mxu0 0.0
    %213 = vmatpush1.msra.mxu0 %v88
    %214 = vmatprep.subr.mxu0 0.0
    %215 = vmatpush1.msra.mxu0 %v87
    %216 = vmatprep.subr.mxu0 0.0
    %217 = vmatpush1.msra.mxu0 %v86
    %218 = vmatprep.subr.mxu0 0.0
    %219 = vmatpush1.msra.mxu0 %v85
    %220 = vmatprep.subr.mxu0 0.0
    %221 = vmatpush1.msra.mxu0 %v84
    %222 = vmatprep.subr.mxu0 0.0
    %223 = vmatpush1.msra.mxu0 %v83
    %224 = vmatprep.subr.mxu0 0.0
    %225 = vmatpush1.msra.mxu0 %v82
    %226 = vmatprep.subr.mxu0 0.0
    %227 = vmatpush1.msra.mxu0 %v81
    %228 = vmatprep.subr.mxu0 0.0
    %229 = vmatpush1.msra.mxu0 %v80
    %230 = vmatprep.subr.mxu0 0.0
    %231 = vmatpush1.msra.mxu0 %v79
    %232 = vmatprep.subr.mxu0 0.0
    %233 = vmatpush1.msra.mxu0 %v78
    %234 = vmatprep.subr.mxu0 0.0
    %235 = vmatpush2.msra.mxu0 0.0
    %236 = vmatprep.subr.mxu0 0.0
    %237 = vmatpush2.msra.mxu0 0.0
    %238 = vmatprep.subr.mxu0 0.0
    %239 = vmatpush2.msra.mxu0 0.0
    %240 = vmatprep.subr.mxu0 0.0
    %241 = vmatpush2.msra.mxu0 0.0
    %242 = vmatprep.subr.mxu0 0.0
    %243 = vmatpush2.msra.mxu0 0.0
    %244 = vmatprep.subr.mxu0 0.0
    %245 = vmatpush2.msra.mxu0 0.0
    %246 = vmatprep.subr.mxu0 0.0
    %247 = vmatpush2.msra.mxu0 0.0
    %248 = vmatprep.subr.mxu0 0.0
    %249 = vmatpush2.msra.mxu0 0.0
    %250 = vmatprep.subr.mxu0 0.0
    %251 = vmatpush2.msra.mxu0 0.0
    %252 = vmatprep.subr.mxu0 0.0
    %253 = vmatpush2.msra.mxu0 0.0
    %254 = vmatprep.subr.mxu0 0.0
    %255 = vmatpush2.msra.mxu0 0.0
    %256 = vmatprep.subr.mxu0 0.0
    %257 = vmatpush2.msra.mxu0 0.0
    %258 = vmatprep.subr.mxu0 0.0
    %259 = vmatpush2.msra.mxu0 0.0
    %260 = vmatprep.subr.mxu0 0.0
    %261 = vmatpush2.msra.mxu0 0.0
    %262 = vmatprep.subr.mxu0 0.0
    %263 = vmatpush2.msra.mxu0 0.0
    %264 = vmatprep.subr.mxu0 0.0
    %265 = vmatpush2.msra.mxu0 0.0
    %266 = vmatprep.mubr.f32.mxu0 0.0
    %267 = vmatmul.mubr.f32.gmra.mxu0 0.0
    %v268 = vpop.f32.mrf.mxu0
    %v269 = vadd.f32 0.0, %v268
    %v270 = vpop.f32.mrf.mxu0
    %271 = vdwg.mxu0
    %v272 = vadd.f32 %v170, %v269
    %v273 = vadd.f32 %v272, %v94
    %v274 = vtanh.pop %v273
    %vm275 = vcmp.gt.s32.totalorder %v201, 0
    %v276 = vsel %vm275, 1, 0
    %vm277 = vcmp.eq.s32.totalorder %v276, 1
    %v278 = vsel %vm277, %v274, 0.0
    %279 = vmatprep.subr.mxu0 0.0
    %280 = vmatpush1.msra.mxu0 %v93
    %281 = vmatprep.subr.mxu0 0.0
    %282 = vmatpush1.msra.mxu0 %v92
    %283 = vmatprep.subr.mxu0 0.0
    %284 = vmatpush1.msra.mxu0 %v91
    %285 = vmatprep.subr.mxu0 0.0
    %286 = vmatpush1.msra.mxu0 %v90
    %287 = vmatprep.subr.mxu0 0.0
    %288 = vmatpush1.msra.mxu0 %v89
    %289 = vmatprep.subr.mxu0 0.0
    %290 = vmatpush1.msra.mxu0 %v88
    %291 = vmatprep.subr.mxu0 0.0
    %292 = vmatpush1.msra.mxu0 %v87
    %293 = vmatprep.subr.mxu0 0.0
    %294 = vmatpush1.msra.mxu0 %v86
    %295 = vmatprep.subr.mxu0 0.0
    %296 = vmatpush1.msra.mxu0 %v85
    %297 = vmatprep.subr.mxu0 0.0
    %298 = vmatpush1.msra.mxu0 %v84
    %299 = vmatprep.subr.mxu0 0.0
    %300 = vmatpush1.msra.mxu0 %v83
    %301 = vmatprep.subr.mxu0 0.0
    %302 = vmatpush1.msra.mxu0 %v82
    %303 = vmatprep.subr.mxu0 0.0
    %304 = vmatpush1.msra.mxu0 %v81
    %305 = vmatprep.subr.mxu0 0.0
    %306 = vmatpush1.msra.mxu0 %v80
    %307 = vmatprep.subr.mxu0 0.0
    %308 = vmatpush1.msra.mxu0 %v79
    %309 = vmatprep.subr.mxu0 0.0
    %310 = vmatpush1.msra.mxu0 %v78
    %311 = vmatprep.subr.mxu0 0.0
    %312 = vmatpush2.msra.mxu0 0.0
    %313 = vmatprep.subr.mxu0 0.0
    %314 = vmatpush2.msra.mxu0 0.0
    %315 = vmatprep.subr.mxu0 0.0
    %316 = vmatpush2.msra.mxu0 0.0
    %317 = vmatprep.subr.mxu0 0.0
    %318 = vmatpush2.msra.mxu0 0.0
    %319 = vmatprep.subr.mxu0 0.0
    %320 = vmatpush2.msra.mxu0 0.0
    %321 = vmatprep.subr.mxu0 0.0
    %322 = vmatpush2.msra.mxu0 0.0
    %323 = vmatprep.subr.mxu0 0.0
    %324 = vmatpush2.msra.mxu0 0.0
    %325 = vmatprep.subr.mxu0 0.0
    %326 = vmatpush2.msra.mxu0 0.0
    %327 = vmatprep.subr.mxu0 0.0
    %328 = vmatpush2.msra.mxu0 0.0
    %329 = vmatprep.subr.mxu0 0.0
    %330 = vmatpush2.msra.mxu0 0.0
    %331 = vmatprep.subr.mxu0 0.0
    %332 = vmatpush2.msra.mxu0 0.0
    %333 = vmatprep.subr.mxu0 0.0
    %334 = vmatpush2.msra.mxu0 0.0
    %335 = vmatprep.subr.mxu0 0.0
    %336 = vmatpush2.msra.mxu0 0.0
    %337 = vmatprep.subr.mxu0 0.0
    %338 = vmatpush2.msra.mxu0 0.0
    %339 = vmatprep.subr.mxu0 0.0
    %340 = vmatpush2.msra.mxu0 0.0
    %341 = vmatprep.subr.mxu0 0.0
    %342 = vmatpush2.msra.mxu0 0.0
    %343 = vmatprep.mubr.f32.mxu0 0.0
    %344 = vmatmul.mubr.f32.gmra.mxu0 %v278
    %v345 = vpop.f32.mrf.mxu0
    %v346 = vadd.f32 0.0, %v345
    %v347 = vpop.f32.mrf.mxu0
    %348 = vdwg.mxu0
    %v350 = vrot.slane %v346, 7
    %v352 = vadd.f32 %v170, %v350
    %v354 = vlaneseq
    %v355 = vshrl.u32 %v354, 7
    %v356 = vsub.s32 0, %v355
    %v357 = vrot.slane %v94, %v356
    %v359 = vadd.f32 %v352, %v357
    %v360 = vtanh.pop %v359
    %vm361 = vcmp.gt.s32.totalorder %v201, 1
    %v362 = vsel %vm361, 1, 0
    %vm363 = vcmp.eq.s32.totalorder %v362, 1
    %v365 = vrot.slane %v278, 7
    %v367 = vsel %vm363, %v360, %v365
    %v369 = vrot.slane %v367, 1
    %371 = vmatprep.subr.mxu0 0.0
    %372 = vmatpush1.msra.mxu0 %v93
    %373 = vmatprep.subr.mxu0 0.0
    %374 = vmatpush1.msra.mxu0 %v92
    %375 = vmatprep.subr.mxu0 0.0
    %376 = vmatpush1.msra.mxu0 %v91
    %377 = vmatprep.subr.mxu0 0.0
    %378 = vmatpush1.msra.mxu0 %v90
    %379 = vmatprep.subr.mxu0 0.0
    %380 = vmatpush1.msra.mxu0 %v89
    %381 = vmatprep.subr.mxu0 0.0
    %382 = vmatpush1.msra.mxu0 %v88
    %383 = vmatprep.subr.mxu0 0.0
    %384 = vmatpush1.msra.mxu0 %v87
    %385 = vmatprep.subr.mxu0 0.0
    %386 = vmatpush1.msra.mxu0 %v86
    %387 = vmatprep.subr.mxu0 0.0
    %388 = vmatpush1.msra.mxu0 %v85
    %389 = vmatprep.subr.mxu0 0.0
    %390 = vmatpush1.msra.mxu0 %v84
    %391 = vmatprep.subr.mxu0 0.0
    %392 = vmatpush1.msra.mxu0 %v83
    %393 = vmatprep.subr.mxu0 0.0
    %394 = vmatpush1.msra.mxu0 %v82
    %395 = vmatprep.subr.mxu0 0.0
    %396 = vmatpush1.msra.mxu0 %v81
    %397 = vmatprep.subr.mxu0 0.0
    %398 = vmatpush1.msra.mxu0 %v80
    %399 = vmatprep.subr.mxu0 0.0
    %400 = vmatpush1.msra.mxu0 %v79
    %401 = vmatprep.subr.mxu0 0.0
    %402 = vmatpush1.msra.mxu0 %v78
    %403 = vmatprep.subr.mxu0 0.0
    %404 = vmatpush2.msra.mxu0 0.0
    %405 = vmatprep.subr.mxu0 0.0
    %406 = vmatpush2.msra.mxu0 0.0
    %407 = vmatprep.subr.mxu0 0.0
    %408 = vmatpush2.msra.mxu0 0.0
    %409 = vmatprep.subr.mxu0 0.0
    %410 = vmatpush2.msra.mxu0 0.0
    %411 = vmatprep.subr.mxu0 0.0
    %412 = vmatpush2.msra.mxu0 0.0
    %413 = vmatprep.subr.mxu0 0.0
    %414 = vmatpush2.msra.mxu0 0.0
    %415 = vmatprep.subr.mxu0 0.0
    %416 = vmatpush2.msra.mxu0 0.0
    %417 = vmatprep.subr.mxu0 0.0
    %418 = vmatpush2.msra.mxu0 0.0
    %419 = vmatprep.subr.mxu0 0.0
    %420 = vmatpush2.msra.mxu0 0.0
    %421 = vmatprep.subr.mxu0 0.0
    %422 = vmatpush2.msra.mxu0 0.0
    %423 = vmatprep.subr.mxu0 0.0
    %424 = vmatpush2.msra.mxu0 0.0
    %425 = vmatprep.subr.mxu0 0.0
    %426 = vmatpush2.msra.mxu0 0.0
    %427 = vmatprep.subr.mxu0 0.0
    %428 = vmatpush2.msra.mxu0 0.0
    %429 = vmatprep.subr.mxu0 0.0
    %430 = vmatpush2.msra.mxu0 0.0
    %431 = vmatprep.subr.mxu0 0.0
    %432 = vmatpush2.msra.mxu0 0.0
    %433 = vmatprep.subr.mxu0 0.0
    %434 = vmatpush2.msra.mxu0 0.0
    %435 = vmatprep.mubr.f32.mxu0 0.0
    %436 = vmatmul.mubr.f32.gmra.mxu0 %v369
    %v437 = vpop.f32.mrf.mxu0
    %v438 = vadd.f32 0.0, %v437
    %v439 = vpop.f32.mrf.mxu0
    %440 = vdwg.mxu0
    %v442 = vrot.slane %v438, 6
    %v444 = vadd.f32 %v170, %v442
    %v445 = vadd.f32 %v444, %v357
    %v446 = vtanh.pop %v445
    %vm447 = vcmp.gt.s32.totalorder %v201, 2
    %v448 = vsel %vm447, 1, 0
    %vm449 = vcmp.eq.s32.totalorder %v448, 1
    %v450 = vrot.slane %v367, 7
    %v452 = vsel %vm449, %v446, %v450
    %v454 = vrot.slane %v452, 2
    %456 = vmatprep.subr.mxu0 0.0
    %457 = vmatpush1.msra.mxu0 %v93
    %458 = vmatprep.subr.mxu0 0.0
    %459 = vmatpush1.msra.mxu0 %v92
    %460 = vmatprep.subr.mxu0 0.0
    %461 = vmatpush1.msra.mxu0 %v91
    %462 = vmatprep.subr.mxu0 0.0
    %463 = vmatpush1.msra.mxu0 %v90
    %464 = vmatprep.subr.mxu0 0.0
    %465 = vmatpush1.msra.mxu0 %v89
    %466 = vmatprep.subr.mxu0 0.0
    %467 = vmatpush1.msra.mxu0 %v88
    %468 = vmatprep.subr.mxu0 0.0
    %469 = vmatpush1.msra.mxu0 %v87
    %470 = vmatprep.subr.mxu0 0.0
    %471 = vmatpush1.msra.mxu0 %v86
    %472 = vmatprep.subr.mxu0 0.0
    %473 = vmatpush1.msra.mxu0 %v85
    %474 = vmatprep.subr.mxu0 0.0
    %475 = vmatpush1.msra.mxu0 %v84
    %476 = vmatprep.subr.mxu0 0.0
    %477 = vmatpush1.msra.mxu0 %v83
    %478 = vmatprep.subr.mxu0 0.0
    %479 = vmatpush1.msra.mxu0 %v82
    %480 = vmatprep.subr.mxu0 0.0
    %481 = vmatpush1.msra.mxu0 %v81
    %482 = vmatprep.subr.mxu0 0.0
    %483 = vmatpush1.msra.mxu0 %v80
    %484 = vmatprep.subr.mxu0 0.0
    %485 = vmatpush1.msra.mxu0 %v79
    %486 = vmatprep.subr.mxu0 0.0
    %487 = vmatpush1.msra.mxu0 %v78
    %488 = vmatprep.subr.mxu0 0.0
    %489 = vmatpush2.msra.mxu0 0.0
    %490 = vmatprep.subr.mxu0 0.0
    %491 = vmatpush2.msra.mxu0 0.0
    %492 = vmatprep.subr.mxu0 0.0
    %493 = vmatpush2.msra.mxu0 0.0
    %494 = vmatprep.subr.mxu0 0.0
    %495 = vmatpush2.msra.mxu0 0.0
    %496 = vmatprep.subr.mxu0 0.0
    %497 = vmatpush2.msra.mxu0 0.0
    %498 = vmatprep.subr.mxu0 0.0
    %499 = vmatpush2.msra.mxu0 0.0
    %500 = vmatprep.subr.mxu0 0.0
    %501 = vmatpush2.msra.mxu0 0.0
    %502 = vmatprep.subr.mxu0 0.0
    %503 = vmatpush2.msra.mxu0 0.0
    %504 = vmatprep.subr.mxu0 0.0
    %505 = vmatpush2.msra.mxu0 0.0
    %506 = vmatprep.subr.mxu0 0.0
    %507 = vmatpush2.msra.mxu0 0.0
    %508 = vmatprep.subr.mxu0 0.0
    %509 = vmatpush2.msra.mxu0 0.0
    %510 = vmatprep.subr.mxu0 0.0
    %511 = vmatpush2.msra.mxu0 0.0
    %512 = vmatprep.subr.mxu0 0.0
    %513 = vmatpush2.msra.mxu0 0.0
    %514 = vmatprep.subr.mxu0 0.0
    %515 = vmatpush2.msra.mxu0 0.0
    %516 = vmatprep.subr.mxu0 0.0
    %517 = vmatpush2.msra.mxu0 0.0
    %518 = vmatprep.subr.mxu0 0.0
    %519 = vmatpush2.msra.mxu0 0.0
    %520 = vmatprep.mubr.f32.mxu0 0.0
    %521 = vmatmul.mubr.f32.gmra.mxu0 %v454
    %v522 = vpop.f32.mrf.mxu0
    %v523 = vadd.f32 0.0, %v522
    %v524 = vpop.f32.mrf.mxu0
    %525 = vdwg.mxu0
    %v527 = vrot.slane %v523, 5
    %v529 = vadd.f32 %v170, %v527
    %v530 = vadd.f32 %v529, %v357
    %v531 = vtanh.pop %v530
    %vm532 = vcmp.gt.s32.totalorder %v201, 3
    %v533 = vsel %vm532, 1, 0
    %vm534 = vcmp.eq.s32.totalorder %v533, 1
    %v535 = vrot.slane %v452, 7
    %v537 = vsel %vm534, %v531, %v535
    %v539 = vrot.slane %v537, 3
    %541 = vmatprep.subr.mxu0 0.0
    %542 = vmatpush1.msra.mxu0 %v93
    %543 = vmatprep.subr.mxu0 0.0
    %544 = vmatpush1.msra.mxu0 %v92
    %545 = vmatprep.subr.mxu0 0.0
    %546 = vmatpush1.msra.mxu0 %v91
    %547 = vmatprep.subr.mxu0 0.0
    %548 = vmatpush1.msra.mxu0 %v90
    %549 = vmatprep.subr.mxu0 0.0
    %550 = vmatpush1.msra.mxu0 %v89
    %551 = vmatprep.subr.mxu0 0.0
    %552 = vmatpush1.msra.mxu0 %v88
    %553 = vmatprep.subr.mxu0 0.0
    %554 = vmatpush1.msra.mxu0 %v87
    %555 = vmatprep.subr.mxu0 0.0
    %556 = vmatpush1.msra.mxu0 %v86
    %557 = vmatprep.subr.mxu0 0.0
    %558 = vmatpush1.msra.mxu0 %v85
    %559 = vmatprep.subr.mxu0 0.0
    %560 = vmatpush1.msra.mxu0 %v84
    %561 = vmatprep.subr.mxu0 0.0
    %562 = vmatpush1.msra.mxu0 %v83
    %563 = vmatprep.subr.mxu0 0.0
    %564 = vmatpush1.msra.mxu0 %v82
    %565 = vmatprep.subr.mxu0 0.0
    %566 = vmatpush1.msra.mxu0 %v81
    %567 = vmatprep.subr.mxu0 0.0
    %568 = vmatpush1.msra.mxu0 %v80
    %569 = vmatprep.subr.mxu0 0.0
    %570 = vmatpush1.msra.mxu0 %v79
    %571 = vmatprep.subr.mxu0 0.0
    %572 = vmatpush1.msra.mxu0 %v78
    %573 = vmatprep.subr.mxu0 0.0
    %574 = vmatpush2.msra.mxu0 0.0
    %575 = vmatprep.subr.mxu0 0.0
    %576 = vmatpush2.msra.mxu0 0.0
    %577 = vmatprep.subr.mxu0 0.0
    %578 = vmatpush2.msra.mxu0 0.0
    %579 = vmatprep.subr.mxu0 0.0
    %580 = vmatpush2.msra.mxu0 0.0
    %581 = vmatprep.subr.mxu0 0.0
    %582 = vmatpush2.msra.mxu0 0.0
    %583 = vmatprep.subr.mxu0 0.0
    %584 = vmatpush2.msra.mxu0 0.0
    %585 = vmatprep.subr.mxu0 0.0
    %586 = vmatpush2.msra.mxu0 0.0
    %587 = vmatprep.subr.mxu0 0.0
    %588 = vmatpush2.msra.mxu0 0.0
    %589 = vmatprep.subr.mxu0 0.0
    %590 = vmatpush2.msra.mxu0 0.0
    %591 = vmatprep.subr.mxu0 0.0
    %592 = vmatpush2.msra.mxu0 0.0
    %593 = vmatprep.subr.mxu0 0.0
    %594 = vmatpush2.msra.mxu0 0.0
    %595 = vmatprep.subr.mxu0 0.0
    %596 = vmatpush2.msra.mxu0 0.0
    %597 = vmatprep.subr.mxu0 0.0
    %598 = vmatpush2.msra.mxu0 0.0
    %599 = vmatprep.subr.mxu0 0.0
    %600 = vmatpush2.msra.mxu0 0.0
    %601 = vmatprep.subr.mxu0 0.0
    %602 = vmatpush2.msra.mxu0 0.0
    %603 = vmatprep.subr.mxu0 0.0
    %604 = vmatpush2.msra.mxu0 0.0
    %605 = vmatprep.mubr.f32.mxu0 0.0
    %606 = vmatmul.mubr.f32.gmra.mxu0 %v539
    %v607 = vpop.f32.mrf.mxu0
    %v608 = vadd.f32 0.0, %v607
    %v609 = vpop.f32.mrf.mxu0
    %610 = vdwg.mxu0
    %v612 = vrot.slane %v608, 4
    %v614 = vadd.f32 %v170, %v612
    %v615 = vadd.f32 %v614, %v357
    %v616 = vtanh.pop %v615
    %vm617 = vcmp.gt.s32.totalorder %v201, 4
    %v618 = vsel %vm617, 1, 0
    %vm619 = vcmp.eq.s32.totalorder %v618, 1
    %v620 = vrot.slane %v537, 7
    %v622 = vsel %vm619, %v616, %v620
    %v624 = vrot.slane %v622, 4
    %626 = vmatprep.subr.mxu0 0.0
    %627 = vmatpush1.msra.mxu0 %v93
    %628 = vmatprep.subr.mxu0 0.0
    %629 = vmatpush1.msra.mxu0 %v92
    %630 = vmatprep.subr.mxu0 0.0
    %631 = vmatpush1.msra.mxu0 %v91
    %632 = vmatprep.subr.mxu0 0.0
    %633 = vmatpush1.msra.mxu0 %v90
    %634 = vmatprep.subr.mxu0 0.0
    %635 = vmatpush1.msra.mxu0 %v89
    %636 = vmatprep.subr.mxu0 0.0
    %637 = vmatpush1.msra.mxu0 %v88
    %638 = vmatprep.subr.mxu0 0.0
    %639 = vmatpush1.msra.mxu0 %v87
    %640 = vmatprep.subr.mxu0 0.0
    %641 = vmatpush1.msra.mxu0 %v86
    %642 = vmatprep.subr.mxu0 0.0
    %643 = vmatpush1.msra.mxu0 %v85
    %644 = vmatprep.subr.mxu0 0.0
    %645 = vmatpush1.msra.mxu0 %v84
    %646 = vmatprep.subr.mxu0 0.0
    %647 = vmatpush1.msra.mxu0 %v83
    %648 = vmatprep.subr.mxu0 0.0
    %649 = vmatpush1.msra.mxu0 %v82
    %650 = vmatprep.subr.mxu0 0.0
    %651 = vmatpush1.msra.mxu0 %v81
    %652 = vmatprep.subr.mxu0 0.0
    %653 = vmatpush1.msra.mxu0 %v80
    %654 = vmatprep.subr.mxu0 0.0
    %655 = vmatpush1.msra.mxu0 %v79
    %656 = vmatprep.subr.mxu0 0.0
    %657 = vmatpush1.msra.mxu0 %v78
    %658 = vmatprep.subr.mxu0 0.0
    %659 = vmatpush2.msra.mxu0 0.0
    %660 = vmatprep.subr.mxu0 0.0
    %661 = vmatpush2.msra.mxu0 0.0
    %662 = vmatprep.subr.mxu0 0.0
    %663 = vmatpush2.msra.mxu0 0.0
    %664 = vmatprep.subr.mxu0 0.0
    %665 = vmatpush2.msra.mxu0 0.0
    %666 = vmatprep.subr.mxu0 0.0
    %667 = vmatpush2.msra.mxu0 0.0
    %668 = vmatprep.subr.mxu0 0.0
    %669 = vmatpush2.msra.mxu0 0.0
    %670 = vmatprep.subr.mxu0 0.0
    %671 = vmatpush2.msra.mxu0 0.0
    %672 = vmatprep.subr.mxu0 0.0
    %673 = vmatpush2.msra.mxu0 0.0
    %674 = vmatprep.subr.mxu0 0.0
    %675 = vmatpush2.msra.mxu0 0.0
    %676 = vmatprep.subr.mxu0 0.0
    %677 = vmatpush2.msra.mxu0 0.0
    %678 = vmatprep.subr.mxu0 0.0
    %679 = vmatpush2.msra.mxu0 0.0
    %680 = vmatprep.subr.mxu0 0.0
    %681 = vmatpush2.msra.mxu0 0.0
    %682 = vmatprep.subr.mxu0 0.0
    %683 = vmatpush2.msra.mxu0 0.0
    %684 = vmatprep.subr.mxu0 0.0
    %685 = vmatpush2.msra.mxu0 0.0
    %686 = vmatprep.subr.mxu0 0.0
    %687 = vmatpush2.msra.mxu0 0.0
    %688 = vmatprep.subr.mxu0 0.0
    %689 = vmatpush2.msra.mxu0 0.0
    %690 = vmatprep.mubr.f32.mxu0 0.0
    %691 = vmatmul.mubr.f32.gmra.mxu0 %v624
    %v692 = vpop.f32.mrf.mxu0
    %v693 = vadd.f32 0.0, %v692
    %v694 = vpop.f32.mrf.mxu0
    %695 = vdwg.mxu0
    %v697 = vrot.slane %v693, 3
    %v699 = vadd.f32 %v170, %v697
    %v700 = vadd.f32 %v699, %v357
    %v701 = vtanh.pop %v700
    %vm702 = vcmp.gt.s32.totalorder %v201, 5
    %v703 = vsel %vm702, 1, 0
    %vm704 = vcmp.eq.s32.totalorder %v703, 1
    %v705 = vrot.slane %v622, 7
    %v707 = vsel %vm704, %v701, %v705
    %v709 = vrot.slane %v707, 5
    %711 = vmatprep.subr.mxu0 0.0
    %712 = vmatpush1.msra.mxu0 %v93
    %713 = vmatprep.subr.mxu0 0.0
    %714 = vmatpush1.msra.mxu0 %v92
    %715 = vmatprep.subr.mxu0 0.0
    %716 = vmatpush1.msra.mxu0 %v91
    %717 = vmatprep.subr.mxu0 0.0
    %718 = vmatpush1.msra.mxu0 %v90
    %719 = vmatprep.subr.mxu0 0.0
    %720 = vmatpush1.msra.mxu0 %v89
    %721 = vmatprep.subr.mxu0 0.0
    %722 = vmatpush1.msra.mxu0 %v88
    %723 = vmatprep.subr.mxu0 0.0
    %724 = vmatpush1.msra.mxu0 %v87
    %725 = vmatprep.subr.mxu0 0.0
    %726 = vmatpush1.msra.mxu0 %v86
    %727 = vmatprep.subr.mxu0 0.0
    %728 = vmatpush1.msra.mxu0 %v85
    %729 = vmatprep.subr.mxu0 0.0
    %730 = vmatpush1.msra.mxu0 %v84
    %731 = vmatprep.subr.mxu0 0.0
    %732 = vmatpush1.msra.mxu0 %v83
    %733 = vmatprep.subr.mxu0 0.0
    %734 = vmatpush1.msra.mxu0 %v82
    %735 = vmatprep.subr.mxu0 0.0
    %736 = vmatpush1.msra.mxu0 %v81
    %737 = vmatprep.subr.mxu0 0.0
    %738 = vmatpush1.msra.mxu0 %v80
    %739 = vmatprep.subr.mxu0 0.0
    %740 = vmatpush1.msra.mxu0 %v79
    %741 = vmatprep.subr.mxu0 0.0
    %742 = vmatpush1.msra.mxu0 %v78
    %743 = vmatprep.subr.mxu0 0.0
    %744 = vmatpush2.msra.mxu0 0.0
    %745 = vmatprep.subr.mxu0 0.0
    %746 = vmatpush2.msra.mxu0 0.0
    %747 = vmatprep.subr.mxu0 0.0
    %748 = vmatpush2.msra.mxu0 0.0
    %749 = vmatprep.subr.mxu0 0.0
    %750 = vmatpush2.msra.mxu0 0.0
    %751 = vmatprep.subr.mxu0 0.0
    %752 = vmatpush2.msra.mxu0 0.0
    %753 = vmatprep.subr.mxu0 0.0
    %754 = vmatpush2.msra.mxu0 0.0
    %755 = vmatprep.subr.mxu0 0.0
    %756 = vmatpush2.msra.mxu0 0.0
    %757 = vmatprep.subr.mxu0 0.0
    %758 = vmatpush2.msra.mxu0 0.0
    %759 = vmatprep.subr.mxu0 0.0
    %760 = vmatpush2.msra.mxu0 0.0
    %761 = vmatprep.subr.mxu0 0.0
    %762 = vmatpush2.msra.mxu0 0.0
    %763 = vmatprep.subr.mxu0 0.0
    %764 = vmatpush2.msra.mxu0 0.0
    %765 = vmatprep.subr.mxu0 0.0
    %766 = vmatpush2.msra.mxu0 0.0
    %767 = vmatprep.subr.mxu0 0.0
    %768 = vmatpush2.msra.mxu0 0.0
    %769 = vmatprep.subr.mxu0 0.0
    %770 = vmatpush2.msra.mxu0 0.0
    %771 = vmatprep.subr.mxu0 0.0
    %772 = vmatpush2.msra.mxu0 0.0
    %773 = vmatprep.subr.mxu0 0.0
    %774 = vmatpush2.msra.mxu0 0.0
    %775 = vmatprep.mubr.f32.mxu0 0.0
    %776 = vmatmul.mubr.f32.gmra.mxu0 %v709
    %v777 = vpop.f32.mrf.mxu0
    %v778 = vadd.f32 0.0, %v777
    %v779 = vpop.f32.mrf.mxu0
    %780 = vdwg.mxu0
    %v782 = vrot.slane %v778, 2
    %v784 = vadd.f32 %v170, %v782
    %v785 = vadd.f32 %v784, %v357
    %v786 = vtanh.pop %v785
    %vm787 = vcmp.gt.s32.totalorder %v201, 6
    %v788 = vsel %vm787, 1, 0
    %vm789 = vcmp.eq.s32.totalorder %v788, 1
    %v790 = vrot.slane %v707, 7
    %v792 = vsel %vm789, %v786, %v790
    %v794 = vrot.slane %v792, 6
    %796 = vmatprep.subr.mxu0 0.0
    %797 = vmatpush1.msra.mxu0 %v93
    %798 = vmatprep.subr.mxu0 0.0
    %799 = vmatpush1.msra.mxu0 %v92
    %800 = vmatprep.subr.mxu0 0.0
    %801 = vmatpush1.msra.mxu0 %v91
    %802 = vmatprep.subr.mxu0 0.0
    %803 = vmatpush1.msra.mxu0 %v90
    %804 = vmatprep.subr.mxu0 0.0
    %805 = vmatpush1.msra.mxu0 %v89
    %806 = vmatprep.subr.mxu0 0.0
    %807 = vmatpush1.msra.mxu0 %v88
    %808 = vmatprep.subr.mxu0 0.0
    %809 = vmatpush1.msra.mxu0 %v87
    %810 = vmatprep.subr.mxu0 0.0
    %811 = vmatpush1.msra.mxu0 %v86
    %812 = vmatprep.subr.mxu0 0.0
    %813 = vmatpush1.msra.mxu0 %v85
    %814 = vmatprep.subr.mxu0 0.0
    %815 = vmatpush1.msra.mxu0 %v84
    %816 = vmatprep.subr.mxu0 0.0
    %817 = vmatpush1.msra.mxu0 %v83
    %818 = vmatprep.subr.mxu0 0.0
    %819 = vmatpush1.msra.mxu0 %v82
    %820 = vmatprep.subr.mxu0 0.0
    %821 = vmatpush1.msra.mxu0 %v81
    %822 = vmatprep.subr.mxu0 0.0
    %823 = vmatpush1.msra.mxu0 %v80
    %824 = vmatprep.subr.mxu0 0.0
    %825 = vmatpush1.msra.mxu0 %v79
    %826 = vmatprep.subr.mxu0 0.0
    %827 = vmatpush1.msra.mxu0 %v78
    %828 = vmatprep.subr.mxu0 0.0
    %829 = vmatpush2.msra.mxu0 0.0
    %830 = vmatprep.subr.mxu0 0.0
    %831 = vmatpush2.msra.mxu0 0.0
    %832 = vmatprep.subr.mxu0 0.0
    %833 = vmatpush2.msra.mxu0 0.0
    %834 = vmatprep.subr.mxu0 0.0
    %835 = vmatpush2.msra.mxu0 0.0
    %836 = vmatprep.subr.mxu0 0.0
    %837 = vmatpush2.msra.mxu0 0.0
    %838 = vmatprep.subr.mxu0 0.0
    %839 = vmatpush2.msra.mxu0 0.0
    %840 = vmatprep.subr.mxu0 0.0
    %841 = vmatpush2.msra.mxu0 0.0
    %842 = vmatprep.subr.mxu0 0.0
    %843 = vmatpush2.msra.mxu0 0.0
    %844 = vmatprep.subr.mxu0 0.0
    %845 = vmatpush2.msra.mxu0 0.0
    %846 = vmatprep.subr.mxu0 0.0
    %847 = vmatpush2.msra.mxu0 0.0
    %848 = vmatprep.subr.mxu0 0.0
    %849 = vmatpush2.msra.mxu0 0.0
    %850 = vmatprep.subr.mxu0 0.0
    %851 = vmatpush2.msra.mxu0 0.0
    %852 = vmatprep.subr.mxu0 0.0
    %853 = vmatpush2.msra.mxu0 0.0
    %854 = vmatprep.subr.mxu0 0.0
    %855 = vmatpush2.msra.mxu0 0.0
    %856 = vmatprep.subr.mxu0 0.0
    %857 = vmatpush2.msra.mxu0 0.0
    %858 = vmatprep.subr.mxu0 0.0
    %859 = vmatpush2.msra.mxu0 0.0
    %860 = vmatprep.mubr.f32.mxu0 0.0
    %861 = vmatmul.mubr.f32.gmra.mxu0 %v794
    %v862 = vpop.f32.mrf.mxu0
    %v863 = vadd.f32 0.0, %v862
    %v864 = vpop.f32.mrf.mxu0
    %865 = vdwg.mxu0
    %v867 = vrot.slane %v863, 1
    %v869 = vadd.f32 %v170, %v867
    %v870 = vadd.f32 %v869, %v357
    %v871 = vtanh.pop %v870
    %vm872 = vcmp.gt.s32.totalorder %v201, 7
    %v873 = vsel %vm872, 1, 0
    %vm874 = vcmp.eq.s32.totalorder %v873, 1
    %v875 = vrot.slane %v792, 7
    %v877 = vsel %vm874, %v871, %v875
    %v878 = vld [vmem:[#allocation8] sm:$0xff]
    %v879 = vld [vmem:[#allocation8 + $0x8] sm:$0xff]
    %v880 = vld [vmem:[#allocation8 + $0x10] sm:$0xff]
    %v881 = vld [vmem:[#allocation8 + $0x18] sm:$0xff]
    %v882 = vld [vmem:[#allocation8 + $0x20] sm:$0xff]
    %v883 = vld [vmem:[#allocation8 + $0x28] sm:$0xff]
    %v884 = vld [vmem:[#allocation8 + $0x30] sm:$0xff]
    %v885 = vld [vmem:[#allocation8 + $0x38] sm:$0xff]
    %v886 = vld [vmem:[#allocation8 + $0x40] sm:$0xff]
    %v887 = vld [vmem:[#allocation8 + $0x48] sm:$0xff]
    %v888 = vld [vmem:[#allocation8 + $0x50] sm:$0xff]
    %v889 = vld [vmem:[#allocation8 + $0x58] sm:$0xff]
    %v890 = vld [vmem:[#allocation8 + $0x60] sm:$0xff]
    %v891 = vld [vmem:[#allocation8 + $0x68] sm:$0xff]
    %v892 = vld [vmem:[#allocation8 + $0x70] sm:$0xff]
    %v893 = vld [vmem:[#allocation8 + $0x78] sm:$0xff]
    %v894 = vld [vmem:[%s5] sm:$0x1]
    %v896 = vrot.slane %v877, 7
    %898 = vmatprep.subr.mxu0 0.0
    %899 = vmatpush1.msra.mxu0 %v893
    %900 = vmatprep.subr.mxu0 0.0
    %901 = vmatpush1.msra.mxu0 %v892
    %902 = vmatprep.subr.mxu0 0.0
    %903 = vmatpush1.msra.mxu0 %v891
    %904 = vmatprep.subr.mxu0 0.0
    %905 = vmatpush1.msra.mxu0 %v890
    %906 = vmatprep.subr.mxu0 0.0
    %907 = vmatpush1.msra.mxu0 %v889
    %908 = vmatprep.subr.mxu0 0.0
    %909 = vmatpush1.msra.mxu0 %v888
    %910 = vmatprep.subr.mxu0 0.0
    %911 = vmatpush1.msra.mxu0 %v887
    %912 = vmatprep.subr.mxu0 0.0
    %913 = vmatpush1.msra.mxu0 %v886
    %914 = vmatprep.subr.mxu0 0.0
    %915 = vmatpush1.msra.mxu0 %v885
    %916 = vmatprep.subr.mxu0 0.0
    %917 = vmatpush1.msra.mxu0 %v884
    %918 = vmatprep.subr.mxu0 0.0
    %919 = vmatpush1.msra.mxu0 %v883
    %920 = vmatprep.subr.mxu0 0.0
    %921 = vmatpush1.msra.mxu0 %v882
    %922 = vmatprep.subr.mxu0 0.0
    %923 = vmatpush1.msra.mxu0 %v881
    %924 = vmatprep.subr.mxu0 0.0
    %925 = vmatpush1.msra.mxu0 %v880
    %926 = vmatprep.subr.mxu0 0.0
    %927 = vmatpush1.msra.mxu0 %v879
    %928 = vmatprep.subr.mxu0 0.0
    %929 = vmatpush1.msra.mxu0 %v878
    %930 = vmatprep.subr.mxu0 0.0
    %931 = vmatpush2.msra.mxu0 0.0
    %932 = vmatprep.subr.mxu0 0.0
    %933 = vmatpush2.msra.mxu0 0.0
    %934 = vmatprep.subr.mxu0 0.0
    %935 = vmatpush2.msra.mxu0 0.0
    %936 = vmatprep.subr.mxu0 0.0
    %937 = vmatpush2.msra.mxu0 0.0
    %938 = vmatprep.subr.mxu0 0.0
    %939 = vmatpush2.msra.mxu0 0.0
    %940 = vmatprep.subr.mxu0 0.0
    %941 = vmatpush2.msra.mxu0 0.0
    %942 = vmatprep.subr.mxu0 0.0
    %943 = vmatpush2.msra.mxu0 0.0
    %944 = vmatprep.subr.mxu0 0.0
    %945 = vmatpush2.msra.mxu0 0.0
    %946 = vmatprep.subr.mxu0 0.0
    %947 = vmatpush2.msra.mxu0 0.0
    %948 = vmatprep.subr.mxu0 0.0
    %949 = vmatpush2.msra.mxu0 0.0
    %950 = vmatprep.subr.mxu0 0.0
    %951 = vmatpush2.msra.mxu0 0.0
    %952 = vmatprep.subr.mxu0 0.0
    %953 = vmatpush2.msra.mxu0 0.0
    %954 = vmatprep.subr.mxu0 0.0
    %955 = vmatpush2.msra.mxu0 0.0
    %956 = vmatprep.subr.mxu0 0.0
    %957 = vmatpush2.msra.mxu0 0.0
    %958 = vmatprep.subr.mxu0 0.0
    %959 = vmatpush2.msra.mxu0 0.0
    %960 = vmatprep.subr.mxu0 0.0
    %961 = vmatpush2.msra.mxu0 0.0
    %962 = vmatprep.mubr.f32.mxu0 0.0
    %963 = vmatmul.mubr.f32.gmra.mxu0 %v896
    %v964 = vpop.f32.mrf.mxu0
    %v965 = vadd.f32 %v894, %v964
    %v966 = vpop.f32.mrf.mxu0
    %967 = vdwg.mxu0
    %v968 = vxor.u32 %v965, 2147483648
    %v969 = vmul.f32 %v968, 1.442695
    %v970 = vpow.pop %v969
    %v971 = vadd.f32 %v970, 1.0
    %v972 = vrcp.pop %v971
    %v973 = vmul.f32 1.0, %v972
    %974 = vst [vmem:[#allocation10] sm:$0x1] %v973
    // Predicated region
    $region42: #{tpu_custom_call.1} parent=1 // pred_check
      _
    $region43: #{tpu_custom_call.1} parent=1 // pred_check_branch
      %976 = sbr.rel (0) target = $region45
    $region44: #{tpu_custom_call.1} parent=1 // pred_region
      %s978 = ssub.s32 16, 16
      %979 = vsyncadd [#allocation4], %s978
      %s981 = sshll.u32 [#allocation10], 4
      %s982 = int_to_ptr.vmem [resolvable:$true] %s981
      %984 = dma.vmem_to_hbm [thread:$0]  %s982, 16, %s6, [#allocation4]
    $region45: #{tpu_custom_call.1} parent=1 // pred_fallthru
      _
    // Predicated region
    $region46: #{tpu_custom_call.1} parent=1 // pred_check
      _
    $region47: #{tpu_custom_call.1} parent=1 // pred_check_branch
      %986 = sbr.rel (0) target = $region49
    $region48: #{tpu_custom_call.1} parent=1 // pred_region
      %987 = dma.done [#allocation4], 16
    $region49: #{tpu_custom_call.1} parent=1 // pred_fallthru
      _
    %988 = vsyncpa [#allocation3], 1
    %989 = vsyncpa [#allocation6], 1
    %990 = vsyncpa [#allocation9], 1
    %991 = vsyncpa [#allocation4], 1

</llo_original>
